<compile_context>
chip_gen: v6e
topology: v6e:2x2x1
jax: 0.10.0
libtpu: 0.0.40
codegen_flags: <defaults>
</compile_context>

<pallas_src>
import jax
import jax.numpy as jnp
from jax.experimental import pallas as pl
from jax.experimental.pallas import tpu as pltpu


def _round_up(x, m):
    return ((x + m - 1) // m) * m


def _cdiv(a, b):
    return (a + b - 1) // b


def _sublane_pack(dtype):
    """Second-to-last-dim alignment: sub-32-bit dtypes pack along sublanes."""
    itemsize = jnp.dtype(dtype).itemsize
    return {4: 8, 2: 16, 1: 32}.get(itemsize, 8)


def _footprint_bytes(tm, tn, tk, in_itemsize, out_itemsize, needs_acc):
    """Approx VMEM footprint: 2x double-buffered streamed tiles + f32 acc."""
    x_tile = tm * tk * in_itemsize
    w_tile = tk * tn * in_itemsize
    b_tile = tn * 4
    o_tile = tm * tn * out_itemsize
    acc = tm * tn * 4 if needs_acc else 0
    return 2 * (x_tile + w_tile + b_tile + o_tile) + acc


def _linear_kernel_acc(x_ref, w_ref, b_ref, o_ref, acc_ref):
    """One (tm, tn) output tile; grid axis 2 (K) is the innermost reduction.

    x_ref: (tm, tk), w_ref: (tk, tn) -- weight already transposed in the
    wrapper, so this is a plain MXU matmul with an f32 accumulator.
    """
    k = pl.program_id(2)
    part = jnp.dot(x_ref[...], w_ref[...], preferred_element_type=jnp.float32)

    @pl.when(k == 0)
    def _first():
        acc_ref[...] = part            # direct assign: no zero-init pass

    @pl.when(k > 0)
    def _accum():
        acc_ref[...] += part

    @pl.when(k == pl.num_programs(2) - 1)
    def _finalize():
        # Bias added exactly once, in f32, then cast to the output dtype.
        o_ref[...] = (acc_ref[...] + b_ref[...].astype(jnp.float32)).astype(o_ref.dtype)


def _linear_kernel_single_k(x_ref, w_ref, b_ref, o_ref):
    """Whole K fits one tile: no accumulator scratch, single fused store."""
    acc = jnp.dot(x_ref[...], w_ref[...], preferred_element_type=jnp.float32)
    o_ref[...] = (acc + b_ref[...].astype(jnp.float32)).astype(o_ref.dtype)


def _choose_tiles(M, N, K, in_dtype, out_dtype, tm_max, tn_max, tk_max,
                  vmem_budget_bytes):
    sub = _sublane_pack(in_dtype)
    in_item = jnp.dtype(in_dtype).itemsize
    out_item = jnp.dtype(out_dtype).itemsize

    Ma, Na, Ka = _round_up(M, sub), _round_up(N, 128), _round_up(K, 128)
    tm = min(tm_max, Ma)
    tn = min(tn_max, Na)
    tk = min(tk_max, Ka)

    def fits(a, b, c):
        return _footprint_bytes(a, b, c, in_item, out_item,
                                needs_acc=_cdiv(Ka, c) > 1) <= vmem_budget_bytes

    # Shrink until the double-buffered plan fits the VMEM budget: tk first,
    # then the output dim covering the SMALLER operand, so the bigger operand
    # (typically the (N, K) weight) is re-streamed from HBM fewer times.
    while not fits(tm, tn, tk) and tk > 128:
        tk = max(128, tk // 2)
    w_dominates = N * K >= M * K
    shrink_order = ("tn", "tm") if w_dominates else ("tm", "tn")
    for which in shrink_order:
        if which == "tn":
            while not fits(tm, tn, tk) and tn > 128:
                tn = max(128, tn // 2)
        else:
            while not fits(tm, tn, tk) and tm > sub:
                tm = max(sub, tm // 2)

    # v7x megacore: guarantee >= 2 "parallel" grid points when the problem
    # allows it so both TensorCores get work (no-op on 1-TC v5e/v6e).
    if _cdiv(Ma, tm) * _cdiv(Na, tn) == 1 and tm >= 2 * sub and M > sub:
        tm = _round_up(tm // 2, sub)

    # Rebalance each tile to minimize padding for the chosen step count
    # (never increases grid size or VMEM footprint).
    def rebalance(dim_a, tile, align):
        steps = _cdiv(dim_a, tile)
        return _round_up(_cdiv(dim_a, steps), align)

    tm = rebalance(Ma, tm, sub)
    tn = rebalance(Na, tn, 128)
    tk = rebalance(Ka, tk, 128)
    return tm, tn, tk


def pallas_linear(x, weight, bias, *, tm_max=1024, tn_max=1024, tk_max=2048,
                  vmem_budget_bytes=36 << 20, interpret=False):
    """nn.Linear forward: x @ weight.T + bias.

    x:      (B, in_dim)
    weight: (out_dim, in_dim)   -- PyTorch layout
    bias:   (out_dim,)
    """
    M, K = x.shape
    N, Kw = weight.shape
    assert K == Kw, (K, Kw)
    assert bias.shape == (N,)

    out_dtype = x.dtype
    tm, tn, tk = _choose_tiles(M, N, K, x.dtype, out_dtype,
                               tm_max, tn_max, tk_max, vmem_budget_bytes)

    Mp, Np, Kp = _round_up(M, tm), _round_up(N, tn), _round_up(K, tk)
    grid = (Mp // tm, Np // tn, Kp // tk)
    gi, gj, gk = grid

    # Single wrapper-side pass over the weight: transpose to (K, N), fused
    # with the zero pad, so the kernel contraction is a plain MN-layout MXU
    # matmul (no per-step XLU transpose of the W tile). K zero-padding
    # contributes 0; padded output rows/cols are sliced off below. Padding N
    # to a 128 multiple keeps every output store lane-dense.
    wt = weight.T
    xp = x if (Mp == M and Kp == K) else jnp.pad(x, ((0, Mp - M), (0, Kp - K)))
    wtp = wt if (Kp == K and Np == N) else jnp.pad(wt, ((0, Kp - K), (0, Np - N)))
    bp = (bias if Np == N else jnp.pad(bias, (0, Np - N))).reshape(1, Np)

    in_specs = [
        pl.BlockSpec((tm, tk), lambda i, j, k: (i, k)),   # x tile
        pl.BlockSpec((tk, tn), lambda i, j, k: (k, j)),   # W^T tile (K, N)
        pl.BlockSpec((1, tn), lambda i, j, k: (0, j)),    # bias tile
    ]
    out_specs = pl.BlockSpec((tm, tn), lambda i, j, k: (i, j))

    if gk == 1:
        kernel = _linear_kernel_single_k
        scratch_shapes = []
    else:
        kernel = _linear_kernel_acc
        scratch_shapes = [pltpu.VMEM((tm, tn), jnp.float32)]

    in_item = jnp.dtype(x.dtype).itemsize
    w_item = jnp.dtype(weight.dtype).itemsize
    b_item = jnp.dtype(bias.dtype).itemsize
    out_item = jnp.dtype(out_dtype).itemsize

    footprint = _footprint_bytes(tm, tn, tk, in_item, out_item, needs_acc=gk > 1)
    # Explicit scoped-VMEM limit: default is only 16 MiB (v5e) / 32 MiB
    # (v6e/v7x); cap at 48 MiB so we keep headroom on v7x's 64 MiB VMEM.
    vmem_limit = int(min(48 << 20, max(32 << 20, footprint + (8 << 20))))

    out = pl.pallas_call(
        kernel,
        out_shape=jax.ShapeDtypeStruct((Mp, Np), out_dtype),
        grid_spec=pltpu.PrefetchScalarGridSpec(
            num_scalar_prefetch=0,
            grid=grid,
            in_specs=in_specs,
            out_specs=out_specs,
            scratch_shapes=scratch_shapes,
        ),
        compiler_params=pltpu.CompilerParams(
            # M/N parallel -> megacore sharding on v7x; K (reduction) last.
            dimension_semantics=("parallel", "parallel", "arbitrary"),
            vmem_limit_bytes=vmem_limit,
        ),
        cost_estimate=pl.CostEstimate(
            flops=2 * M * N * K,
            transcendentals=0,
            # Re-streaming aware: W is read grid_i times, x grid_j times.
            bytes_accessed=(gi * Np * Kp * w_item
                            + gj * Mp * Kp * in_item
                            + Mp * Np * out_item
                            + Np * b_item),
        ),
        interpret=interpret,
    )(xp, wtp, bp)

    if Mp != M or Np != N:
        out = out[:M, :N]
    return out


def linear(x, weight, bias, *, pallas_threshold=1 << 20):
    """Dispatcher: tiny problems are cheaper as a plain XLA dot (it fuses with
    neighboring ops); production shapes go through the tiled Pallas kernel."""
    M, K = x.shape
    N = weight.shape[0]
    if M * N * K < pallas_threshold:
        return x @ weight.T + bias
    return pallas_linear(x, weight, bias)


if __name__ == "__main__":
    # Small shapes consistent with nn.Linear(in_dim, out_dim)
    B, in_dim, out_dim = 8, 32, 16

    key = jax.random.PRNGKey(0)
    kx, kw, kb = jax.random.split(key, 3)

    # Deterministic parameter init (PyTorch-style uniform bound 1/sqrt(in_dim))
    bound = 1.0 / (in_dim ** 0.5)
    x = jax.random.normal(kx, (B, in_dim), dtype=jnp.float32)
    weight = jax.random.uniform(kw, (out_dim, in_dim), jnp.float32, -bound, bound)
    bias = jax.random.uniform(kb, (out_dim,), jnp.float32, -bound, bound)

    # Exercise the Pallas kernel path explicitly (the dispatcher would route
    # this toy shape to plain XLA). This shape takes the grid_k == 1 fast path.
    out = pallas_linear(x, weight, bias)
    jax.block_until_ready(out)
    ref = x @ weight.T + bias
    assert out.shape == (B, out_dim)
    assert jnp.allclose(out, ref, atol=1e-5, rtol=1e-5)

    # Also exercise the K-tiled accumulator path (grid_k > 1) and the megacore
    # split at a still-small shape by capping tk.
    M2, K2, N2 = 16, 512, 128
    x2 = jax.random.normal(kx, (M2, K2), dtype=jnp.float32)
    w2 = jax.random.uniform(kw, (N2, K2), jnp.float32, -0.05, 0.05)
    b2 = jax.random.uniform(kb, (N2,), jnp.float32, -0.05, 0.05)
    out2 = pallas_linear(x2, w2, b2, tk_max=128)
    jax.block_until_ready(out2)
    ref2 = x2 @ w2.T + b2
    assert out2.shape == (M2, N2)
    assert jnp.allclose(out2, ref2, atol=5e-3, rtol=5e-3)

    print("KERNEL_OK")
</pallas_src>

<mosaic_0001>
module attributes {stable_mosaic.version = 11 : i64} {
  func.func @_linear_kernel_single_k(%arg0: i32, %arg1: i32, %arg2: i32, %arg3: memref<8x128xf32, #tpu.memory_space<vmem>>, %arg4: memref<128x128xf32, #tpu.memory_space<vmem>>, %arg5: memref<1x128xf32, #tpu.memory_space<vmem>>, %arg6: memref<8x128xf32, #tpu.memory_space<vmem>>) attributes {dimension_semantics = [#tpu.dimension_semantics<parallel>, #tpu.dimension_semantics<parallel>, #tpu.dimension_semantics<arbitrary>], iteration_bounds = array<i64: 1, 1, 1>, scalar_prefetch = 0 : i64, scratch_operands = 0 : i64, tpu.core_type = #tpu.core_type<tc>, window_params = [{transform_indices = @transform_0, window_bounds = array<i64: 8, 128>}, {transform_indices = @transform_1, window_bounds = array<i64: 128, 128>}, {transform_indices = @transform_2, window_bounds = array<i64: 1, 128>}, {transform_indices = @transform_3, window_bounds = array<i64: 8, 128>}]} {
    %c0 = arith.constant 0 : index
    %c0_0 = arith.constant 0 : index
    %0 = vector.load %arg3[%c0, %c0_0] : memref<8x128xf32, #tpu.memory_space<vmem>>, vector<8x128xf32>
    %c0_1 = arith.constant 0 : index
    %c0_2 = arith.constant 0 : index
    %1 = vector.load %arg4[%c0_1, %c0_2] : memref<128x128xf32, #tpu.memory_space<vmem>>, vector<128x128xf32>
    %cst = arith.constant dense<0.000000e+00> : vector<8x128xf32>
    %2 = tpu.matmul %0, %1, %cst {dimension_numbers = #tpu.dot_dimension_numbers<[1], [0], [0], [1], [0, 0, 1, 1], [], []>} : vector<8x128xf32>, vector<128x128xf32>, vector<8x128xf32> -> vector<8x128xf32>
    %c0_3 = arith.constant 0 : index
    %c0_4 = arith.constant 0 : index
    %3 = vector.load %arg5[%c0_3, %c0_4] : memref<1x128xf32, #tpu.memory_space<vmem>>, vector<1x128xf32>
    %4 = vector.broadcast %3 : vector<1x128xf32> to vector<8x128xf32>
    %5 = arith.addf %2, %4 : vector<8x128xf32>
    %c0_5 = arith.constant 0 : index
    %c0_6 = arith.constant 0 : index
    %6 = vector.load %arg6[%c0_5, %c0_6] : memref<8x128xf32, #tpu.memory_space<vmem>>, vector<8x128xf32>
    tpu.vector_store %arg6[%c0_5, %c0_6], %5 {strides = array<i32>} : memref<8x128xf32, #tpu.memory_space<vmem>>, vector<8x128xf32>,
    return
  }
  func.func @transform_0(%arg0: i32, %arg1: i32, %arg2: i32) -> (i32, i32) {
    %c0_i32 = arith.constant 0 : i32
    return %arg0, %arg2 : i32, i32
  }
  func.func @transform_1(%arg0: i32, %arg1: i32, %arg2: i32) -> (i32, i32) {
    %c0_i32 = arith.constant 0 : i32
    return %arg2, %arg1 : i32, i32
  }
  func.func @transform_2(%arg0: i32, %arg1: i32, %arg2: i32) -> (i32, i32) {
    %c0_i32 = arith.constant 0 : i32
    %c0_i32_0 = arith.constant 0 : i32
    return %c0_i32, %arg1 : i32, i32
  }
  func.func @transform_3(%arg0: i32, %arg1: i32, %arg2: i32) -> (i32, i32) {
    %c0_i32 = arith.constant 0 : i32
    return %arg0, %arg1 : i32, i32
  }
}

</mosaic_0001>

<llo_original>
// kernel: tpu_custom_call.1
$region0: #{tpu_custom_call.1}
  #allocation0 [shape = 'u32[]', space=smem, size = 0x4, offset = 0x4, fixed_abs, tag = 'smem constant byte address 0x4 - core index']
  #allocation1 [shape = 'u32[144,128]{1,0:T(1,128)}', space=vmem, size = 0x12000, scoped, tag = 'internal scratch']
  %s0 = inlined_call_operand.hbm [shape: f32[8,128], index: 0, kind: input, shape index: {}]
  %s1 = inlined_call_operand.hbm [shape: f32[128,128], index: 1, kind: input, shape index: {}]
  %s2 = inlined_call_operand.vmem [shape: f32[1,128], index: 2, kind: input, shape index: {}]
  %s3 = inlined_call_operand.hbm [shape: f32[8,128], index: 3, kind: output, shape index: {}]
  %s4 = sld [smem:[#allocation0]]
  $region30: #{tpu_custom_call.1} parent=0
    _
  %s6 = ssub.s32 1, %s4
  %s7 = scalar_select 0, %s6, %s4
  $region1: #{tpu_custom_call.1} parent=0
    #allocation2 [shape = 'u8[4096]{0}', space=vmem, size = 0x1000, scoped, tag = 'input window, operand 0, single buffered']
    #allocation3 [shape = 's32[1]{0}', space=sflag, size = 0x4, scoped, tag = 'scoped memory for tpu_custom_call.1']
    #allocation4 [shape = 's32[1]{0}', space=sflag, size = 0x4, scoped, tag = 'scoped memory for tpu_custom_call.1']
    #allocation5 [shape = 'u8[65536]{0}', space=vmem, size = 0x10000, scoped, tag = 'input window, operand 1, single buffered']
    #allocation6 [shape = 's32[1]{0}', space=sflag, size = 0x4, scoped, tag = 'scoped memory for tpu_custom_call.1']
    #allocation7 [shape = 'u8[4096]{0}', space=vmem, size = 0x1000, scoped, tag = 'output window, operand 0, single buffered']
    %8 = vsyncpa [#allocation3], 0
    %9 = vsyncpa [#allocation6], 0
    %10 = vsyncpa [#allocation4], 0
    // Predicated region
    $region2: #{tpu_custom_call.1} parent=1 // pred_check
      _
    $region3: #{tpu_custom_call.1} parent=1 // pred_check_branch
      %12 = sbr.rel (0) target = $region5
    $region4: #{tpu_custom_call.1} parent=1 // pred_region
      %s14 = ssub.s32 128, 128
      %15 = vsyncadd [#allocation3], %s14
      %s17 = sshll.u32 [#allocation2], 4
      %s18 = int_to_ptr.vmem [resolvable:$true] %s17
      %20 = dma.hbm_to_vmem [thread:$0]  %s0, 128, %s18, [#allocation3]
    $region5: #{tpu_custom_call.1} parent=1 // pred_fallthru
      _
    // Predicated region
    $region6: #{tpu_custom_call.1} parent=1 // pred_check
      _
    $region7: #{tpu_custom_call.1} parent=1 // pred_check_branch
      %22 = sbr.rel (0) target = $region9
    $region8: #{tpu_custom_call.1} parent=1 // pred_region
      %s24 = ssub.s32 2048, 2048
      %25 = vsyncadd [#allocation6], %s24
      %s26 = sshll.u32 [#allocation5], 4
      %s27 = int_to_ptr.vmem [resolvable:$true] %s26
      %32 = dma.hbm_to_vmem [thread:$0]  %s1, 2048, %s27, [#allocation6], 128, 128, 8
    $region9: #{tpu_custom_call.1} parent=1 // pred_fallthru
      _
    // Predicated region
    $region10: #{tpu_custom_call.1} parent=1 // pred_check
      _
    $region11: #{tpu_custom_call.1} parent=1 // pred_check_branch
      %34 = sbr.rel (0) target = $region13
    $region12: #{tpu_custom_call.1} parent=1 // pred_region
      _
    $region13: #{tpu_custom_call.1} parent=1 // pred_fallthru
      _
    // Predicated region
    $region14: #{tpu_custom_call.1} parent=1 // pred_check
      _
    $region15: #{tpu_custom_call.1} parent=1 // pred_check_branch
      %36 = sbr.rel (0) target = $region17
    $region16: #{tpu_custom_call.1} parent=1 // pred_region
      %37 = dma.done [#allocation3], 128
    $region17: #{tpu_custom_call.1} parent=1 // pred_fallthru
      _
    // Predicated region
    $region18: #{tpu_custom_call.1} parent=1 // pred_check
      _
    $region19: #{tpu_custom_call.1} parent=1 // pred_check_branch
      %39 = sbr.rel (0) target = $region21
    $region20: #{tpu_custom_call.1} parent=1 // pred_region
      %40 = dma.done [#allocation6], 2048
    $region21: #{tpu_custom_call.1} parent=1 // pred_fallthru
      _
    %v41 = vld [vmem:[#allocation2] sm:$0xff]
    %v42 = vld [vmem:[#allocation5] sm:$0xff]
    %v43 = vld [vmem:[#allocation5 + $0x8] sm:$0xff]
    %v44 = vld [vmem:[#allocation5 + $0x10] sm:$0xff]
    %v45 = vld [vmem:[#allocation5 + $0x18] sm:$0xff]
    %v46 = vld [vmem:[#allocation5 + $0x20] sm:$0xff]
    %v47 = vld [vmem:[#allocation5 + $0x28] sm:$0xff]
    %v48 = vld [vmem:[#allocation5 + $0x30] sm:$0xff]
    %v49 = vld [vmem:[#allocation5 + $0x38] sm:$0xff]
    %v50 = vld [vmem:[#allocation5 + $0x40] sm:$0xff]
    %v51 = vld [vmem:[#allocation5 + $0x48] sm:$0xff]
    %v52 = vld [vmem:[#allocation5 + $0x50] sm:$0xff]
    %v53 = vld [vmem:[#allocation5 + $0x58] sm:$0xff]
    %v54 = vld [vmem:[#allocation5 + $0x60] sm:$0xff]
    %v55 = vld [vmem:[#allocation5 + $0x68] sm:$0xff]
    %v56 = vld [vmem:[#allocation5 + $0x70] sm:$0xff]
    %v57 = vld [vmem:[#allocation5 + $0x78] sm:$0xff]
    %v58 = vld [vmem:[%s2] sm:$0x1]
    %v60 = vlaneseq
    %v61 = vshrl.u32 %v60, 7
    %v62 = vsub.s32 0, %v61
    %v63 = vrot.slane %v58, %v62
    %65 = vmatprep.subr.mxu0 0.0
    %66 = vmatpush1.msra.mxu0 %v57
    %67 = vmatprep.subr.mxu0 0.0
    %68 = vmatpush1.msra.mxu0 %v56
    %69 = vmatprep.subr.mxu0 0.0
    %70 = vmatpush1.msra.mxu0 %v55
    %71 = vmatprep.subr.mxu0 0.0
    %72 = vmatpush1.msra.mxu0 %v54
    %73 = vmatprep.subr.mxu0 0.0
    %74 = vmatpush1.msra.mxu0 %v53
    %75 = vmatprep.subr.mxu0 0.0
    %76 = vmatpush1.msra.mxu0 %v52
    %77 = vmatprep.subr.mxu0 0.0
    %78 = vmatpush1.msra.mxu0 %v51
    %79 = vmatprep.subr.mxu0 0.0
    %80 = vmatpush1.msra.mxu0 %v50
    %81 = vmatprep.subr.mxu0 0.0
    %82 = vmatpush1.msra.mxu0 %v49
    %83 = vmatprep.subr.mxu0 0.0
    %84 = vmatpush1.msra.mxu0 %v48
    %85 = vmatprep.subr.mxu0 0.0
    %86 = vmatpush1.msra.mxu0 %v47
    %87 = vmatprep.subr.mxu0 0.0
    %88 = vmatpush1.msra.mxu0 %v46
    %89 = vmatprep.subr.mxu0 0.0
    %90 = vmatpush1.msra.mxu0 %v45
    %91 = vmatprep.subr.mxu0 0.0
    %92 = vmatpush1.msra.mxu0 %v44
    %93 = vmatprep.subr.mxu0 0.0
    %94 = vmatpush1.msra.mxu0 %v43
    %95 = vmatprep.subr.mxu0 0.0
    %96 = vmatpush1.msra.mxu0 %v42
    %97 = vmatprep.subr.mxu0 0.0
    %98 = vmatpush2.msra.mxu0 0.0
    %99 = vmatprep.subr.mxu0 0.0
    %100 = vmatpush2.msra.mxu0 0.0
    %101 = vmatprep.subr.mxu0 0.0
    %102 = vmatpush2.msra.mxu0 0.0
    %103 = vmatprep.subr.mxu0 0.0
    %104 = vmatpush2.msra.mxu0 0.0
    %105 = vmatprep.subr.mxu0 0.0
    %106 = vmatpush2.msra.mxu0 0.0
    %107 = vmatprep.subr.mxu0 0.0
    %108 = vmatpush2.msra.mxu0 0.0
    %109 = vmatprep.subr.mxu0 0.0
    %110 = vmatpush2.msra.mxu0 0.0
    %111 = vmatprep.subr.mxu0 0.0
    %112 = vmatpush2.msra.mxu0 0.0
    %113 = vmatprep.subr.mxu0 0.0
    %114 = vmatpush2.msra.mxu0 0.0
    %115 = vmatprep.subr.mxu0 0.0
    %116 = vmatpush2.msra.mxu0 0.0
    %117 = vmatprep.subr.mxu0 0.0
    %118 = vmatpush2.msra.mxu0 0.0
    %119 = vmatprep.subr.mxu0 0.0
    %120 = vmatpush2.msra.mxu0 0.0
    %121 = vmatprep.subr.mxu0 0.0
    %122 = vmatpush2.msra.mxu0 0.0
    %123 = vmatprep.subr.mxu0 0.0
    %124 = vmatpush2.msra.mxu0 0.0
    %125 = vmatprep.subr.mxu0 0.0
    %126 = vmatpush2.msra.mxu0 0.0
    %127 = vmatprep.subr.mxu0 0.0
    %128 = vmatpush2.msra.mxu0 0.0
    %129 = vmatprep.mubr.f32.mxu0 0.0
    %130 = vmatmul.mubr.f32.gmra.mxu0 %v41
    %v131 = vpop.f32.mrf.mxu0
    %v132 = vadd.f32 %v63, %v131
    %v133 = vpop.f32.mrf.mxu0
    %134 = vdwg.mxu0
    %135 = vst [vmem:[#allocation7] sm:$0xff] %v132
    // Predicated region
    $region22: #{tpu_custom_call.1} parent=1 // pred_check
      _
    $region23: #{tpu_custom_call.1} parent=1 // pred_check_branch
      %137 = sbr.rel (0) target = $region25
    $region24: #{tpu_custom_call.1} parent=1 // pred_region
      %s139 = ssub.s32 128, 128
      %140 = vsyncadd [#allocation4], %s139
      %s142 = sshll.u32 [#allocation7], 4
      %s143 = int_to_ptr.vmem [resolvable:$true] %s142
      %145 = dma.vmem_to_hbm [thread:$0]  %s143, 128, %s3, [#allocation4]
    $region25: #{tpu_custom_call.1} parent=1 // pred_fallthru
      _
    // Predicated region
    $region26: #{tpu_custom_call.1} parent=1 // pred_check
      _
    $region27: #{tpu_custom_call.1} parent=1 // pred_check_branch
      %147 = sbr.rel (0) target = $region29
    $region28: #{tpu_custom_call.1} parent=1 // pred_region
      %148 = dma.done [#allocation4], 128
    $region29: #{tpu_custom_call.1} parent=1 // pred_fallthru
      _
    %149 = vsyncpa [#allocation3], 1
    %150 = vsyncpa [#allocation6], 1
    %151 = vsyncpa [#allocation4], 1

</llo_original>
